<compile_context>
chip_gen: v7x
topology: tpu7x:2x2x1
jax: 0.10.0
libtpu: 0.0.40
codegen_flags: <defaults>
</compile_context>

<pallas_src>
import functools

import jax
import jax.numpy as jnp
from jax.experimental import pallas as pl
from jax.experimental.pallas import tpu as pltpu


def _losses_kernel(x_ref, t_ref, o_ref, *, type_loss, reduction, approx):
    x = x_ref[...].astype(jnp.float32)
    t = t_ref[...].astype(jnp.float32)

    # numerically-stable softmax / log-softmax along the last (lane) axis
    m = jnp.max(x, axis=-1, keepdims=True)
    ex = jnp.exp(x - m)
    denom = jnp.sum(ex, axis=-1, keepdims=True)

    if type_loss == 0:
        logp = (x - m) - jnp.log(denom)
        ret = -1.0 * (logp * t)
    else:
        # EUP vrcp when approx=True (separate VLIW slot -> effectively free)
        p = ex * pl.reciprocal(denom, approx=approx)
        d = p - t
        ret = jnp.abs(d) if type_loss == 1 else d * d

    if reduction == "none":
        o_ref[...] = ret
    else:
        red = jnp.sum(ret, axis=-1)               # (tile_n,) -> lane-major
        if reduction == "mean":
            red = red * (1.0 / ret.shape[-1])     # fold 1/C as a constant mul
        # lane-dense store: one (1, 1, tile_n) row instead of a masked
        # (tile_n, 1) column of vst.msk stores.
        o_ref[...] = red.reshape(o_ref.shape)


def _pick_tile_n(n_rows, n_classes, in_itemsize, full_output):
    """Row tile so the double-buffered pipeline blocks fit a ~8 MiB budget."""
    out_bytes = n_classes * 4 if full_output else 4
    bytes_per_row = 2 * (2 * n_classes * in_itemsize + out_bytes)  # 2 buffers
    budget = 8 * 1024 * 1024
    t = budget // max(bytes_per_row, 1)
    t = min(t, 4096)                    # diminishing returns; bounds f32 temps
    t = min(t, max(8, n_rows // 2))     # keep >= 2 grid steps (v7x megacore)
    return max(8, (t // 8) * 8)         # sublane alignment


def losses_forward(inputs, targets, *, reduction="mean", type_loss=2,
                   tile_n=None, approx_reciprocal=True,
                   vmem_limit_bytes=32 * 1024 * 1024):
    """Pallas equivalent of losses(reduction, type_loss).forward(inputs, targets).

    Loss math is done in f32 inside the kernel regardless of input dtype
    (bf16 inputs are fine and halve HBM traffic); output is f32.
    """
    assert inputs.shape == targets.shape, "inputs/targets must match"
    orig_shape = inputs.shape
    C = orig_shape[-1]
    x = inputs.reshape(-1, C)
    t = targets.reshape(-1, C)
    N = x.shape[0]

    if tile_n is None:
        tile_n = _pick_tile_n(N, C, jnp.dtype(inputs.dtype).itemsize,
                              reduction == "none")
    tile_n = max(8, (int(tile_n) // 8) * 8)

    num_tiles = -(-N // tile_n)
    n_pad = num_tiles * tile_n
    if n_pad != N:
        # pad rows with zeros (softmax of zeros is finite); sliced off below
        x = jnp.pad(x, ((0, n_pad - N), (0, 0)))
        t = jnp.pad(t, ((0, n_pad - N), (0, 0)))

    in_specs = [
        pl.BlockSpec((tile_n, C), lambda i: (i, 0)),
        pl.BlockSpec((tile_n, C), lambda i: (i, 0)),
    ]
    if reduction == "none":
        out_shape = jax.ShapeDtypeStruct((n_pad, C), jnp.float32)
        out_spec = pl.BlockSpec((tile_n, C), lambda i: (i, 0))
    else:
        # lane-dense output: one row of per-row results per grid step
        out_shape = jax.ShapeDtypeStruct((num_tiles, 1, tile_n), jnp.float32)
        out_spec = pl.BlockSpec((1, 1, tile_n), lambda i: (i, 0, 0))

    kernel = functools.partial(_losses_kernel, type_loss=type_loss,
                               reduction=reduction, approx=approx_reciprocal)

    out = pl.pallas_call(
        kernel,
        out_shape=out_shape,
        grid_spec=pltpu.PrefetchScalarGridSpec(
            num_scalar_prefetch=0,
            grid=(num_tiles,),
            in_specs=in_specs,
            out_specs=out_spec,
        ),
        compiler_params=pltpu.CompilerParams(
            dimension_semantics=("parallel",),
            vmem_limit_bytes=vmem_limit_bytes,
        ),
    )(x, t)

    if reduction == "none":
        return out[:N].reshape(orig_shape)
    return out.reshape(-1)[:N].reshape(orig_shape[:-1])


def _losses_ref(inputs, targets, *, reduction="mean", type_loss=2):
    """Pure-JAX reference mirroring the PyTorch module."""
    x = inputs.astype(jnp.float32)
    t = targets.astype(jnp.float32)
    if type_loss == 1:
        ret = jnp.abs(jax.nn.softmax(x, axis=-1) - t)
    elif type_loss == 0:
        ret = -1.0 * (jax.nn.log_softmax(x, axis=-1) * t)
    else:
        ret = (jax.nn.softmax(x, axis=-1) - t) ** 2
    if reduction != "none":
        ret = jnp.mean(ret, axis=-1) if reduction == "mean" else jnp.sum(ret, axis=-1)
    return ret


if __name__ == "__main__":
    key = jax.random.PRNGKey(0)
    k_in, k_tg = jax.random.split(key)

    # small, ragged batch (exercises wrapper padding) x 32 classes
    N, C = 250, 32
    inputs = jax.random.normal(k_in, (N, C), dtype=jnp.float32)
    labels = jax.random.randint(k_tg, (N,), 0, C)
    targets = jax.nn.one_hot(labels, C, dtype=jnp.float32)

    ok = True
    for type_loss in (2, 1, 0):
        for reduction in ("mean", "sum", "none"):
            want = _losses_ref(inputs, targets, reduction=reduction,
                               type_loss=type_loss)
            # exact-reciprocal path: tight tolerance
            got = jax.block_until_ready(
                losses_forward(inputs, targets, reduction=reduction,
                               type_loss=type_loss, approx_reciprocal=False))
            if got.shape != want.shape or not jnp.allclose(got, want,
                                                           atol=1e-5, rtol=1e-5):
                ok = False
            # default fast path (EUP approx reciprocal, ~2^-12 rel err): loose
            got_fast = jax.block_until_ready(
                losses_forward(inputs, targets, reduction=reduction,
                               type_loss=type_loss))
            if not jnp.allclose(got_fast, want, atol=2e-3, rtol=2e-3):
                ok = False

    # bf16 inputs/targets: kernel upcasts in VMEM, halving HBM traffic
    x16 = inputs.astype(jnp.bfloat16)
    t16 = targets.astype(jnp.bfloat16)
    want16 = _losses_ref(x16, t16)
    got16 = jax.block_until_ready(losses_forward(x16, t16,
                                                 approx_reciprocal=False))
    if not jnp.allclose(got16, want16, atol=1e-5, rtol=1e-5):
        ok = False

    if ok:
        print("KERNEL_OK")
</pallas_src>

<mosaic_0001>
module attributes {stable_mosaic.version = 11 : i64} {
  func.func @_losses_kernel(%arg0: i32, %arg1: memref<120x32xf32, #tpu.memory_space<vmem>>, %arg2: memref<120x32xf32, #tpu.memory_space<vmem>>, %arg3: memref<1x1x120xf32, #tpu.memory_space<vmem>>) attributes {dimension_semantics = [#tpu.dimension_semantics<parallel>], iteration_bounds = array<i64: 3>, scalar_prefetch = 0 : i64, scratch_operands = 0 : i64, tpu.core_type = #tpu.core_type<tc>, window_params = [{transform_indices = @transform_0, window_bounds = array<i64: 120, 32>}, {transform_indices = @transform_1, window_bounds = array<i64: 120, 32>}, {transform_indices = @transform_2, window_bounds = array<i64: 1, 1, 120>}]} {
    %c0 = arith.constant 0 : index
    %c0_0 = arith.constant 0 : index
    %0 = vector.load %arg1[%c0, %c0_0] : memref<120x32xf32, #tpu.memory_space<vmem>>, vector<120x32xf32>
    %c0_1 = arith.constant 0 : index
    %c0_2 = arith.constant 0 : index
    %1 = vector.load %arg2[%c0_1, %c0_2] : memref<120x32xf32, #tpu.memory_space<vmem>>, vector<120x32xf32>
    %cst = arith.constant dense<0xFF800000> : vector<120xf32>
    %2 = vector.multi_reduction <maximumf>, %0, %cst [1] : vector<120x32xf32> to vector<120xf32>
    %3 = vector.shape_cast %2 : vector<120xf32> to vector<120x1xf32>
    %4 = vector.broadcast %3 : vector<120x1xf32> to vector<120x32xf32>
    %5 = arith.subf %0, %4 : vector<120x32xf32>
    %6 = math.exp %5 : vector<120x32xf32>
    %cst_3 = arith.constant dense<0.000000e+00> : vector<120xf32>
    %7 = vector.multi_reduction <add>, %6, %cst_3 [1] : vector<120x32xf32> to vector<120xf32>
    %8 = vector.shape_cast %7 : vector<120xf32> to vector<120x1xf32>
    %9 = tpu.reciprocal %8 : vector<120x1xf32> -> vector<120x1xf32>
    %10 = vector.broadcast %9 : vector<120x1xf32> to vector<120x32xf32>
    %11 = arith.mulf %6, %10 : vector<120x32xf32>
    %12 = arith.subf %11, %1 : vector<120x32xf32>
    %13 = arith.mulf %12, %12 : vector<120x32xf32>
    %cst_4 = arith.constant dense<0.000000e+00> : vector<120xf32>
    %14 = vector.multi_reduction <add>, %13, %cst_4 [1] : vector<120x32xf32> to vector<120xf32>
    %cst_5 = arith.constant 3.125000e-02 : f32
    %15 = vector.broadcast %cst_5 : f32 to vector<120xf32>
    %16 = arith.mulf %14, %15 : vector<120xf32>
    %17 = vector.shape_cast %16 : vector<120xf32> to vector<1x1x120xf32>
    %c0_6 = arith.constant 0 : index
    %c0_7 = arith.constant 0 : index
    %c0_8 = arith.constant 0 : index
    %18 = vector.load %arg3[%c0_6, %c0_7, %c0_8] : memref<1x1x120xf32, #tpu.memory_space<vmem>>, vector<1x1x120xf32>
    tpu.vector_store %arg3[%c0_6, %c0_7, %c0_8], %17 {strides = array<i32>} : memref<1x1x120xf32, #tpu.memory_space<vmem>>, vector<1x1x120xf32>,
    return
  }
  func.func @transform_0(%arg0: i32) -> (i32, i32) {
    %c0_i32 = arith.constant 0 : i32
    %c0_i32_0 = arith.constant 0 : i32
    return %arg0, %c0_i32 : i32, i32
  }
  func.func @transform_1(%arg0: i32) -> (i32, i32) {
    %c0_i32 = arith.constant 0 : i32
    %c0_i32_0 = arith.constant 0 : i32
    return %arg0, %c0_i32 : i32, i32
  }
  func.func @transform_2(%arg0: i32) -> (i32, i32, i32) {
    %c0_i32 = arith.constant 0 : i32
    %c0_i32_0 = arith.constant 0 : i32
    %c0_i32_1 = arith.constant 0 : i32
    return %arg0, %c0_i32, %c0_i32_0 : i32, i32, i32
  }
}

</mosaic_0001>

<llo_original>
// kernel: tpu_custom_call.1
$region0: #{tpu_custom_call.1}
  #allocation0 [shape = 'u32[]', space=smem, size = 0x4, offset = 0x4, fixed_abs, tag = 'smem constant byte address 0x4 - core index']
  #allocation1 [shape = 'u32[144,128]{1,0:T(1,128)}', space=vmem, size = 0x12000, scoped, tag = 'internal scratch']
  %s0 = inlined_call_operand.vmem [shape: f32[360,32], index: 0, kind: input, shape index: {}]
  %s1 = inlined_call_operand.vmem [shape: f32[360,32], index: 1, kind: input, shape index: {}]
  %s2 = inlined_call_operand.hbm [shape: f32[3,1,120], index: 2, kind: output, shape index: {}]
  %s3 = sld [smem:[#allocation0]]
  $region41: #{tpu_custom_call.1} parent=0
    _
  %s5 = ssub.s32 1, %s3
  %s6 = scalar_select 0, %s5, %s3
  $region1: #{tpu_custom_call.1} parent=0
    #allocation2 [shape = 'u8[1024]{0}', space=vmem, size = 0x400, scoped, tag = 'output window, operand 0']
    #allocation3 [shape = 's32[2]{0}', space=sflag, size = 0x8, scoped, tag = 'scoped memory for tpu_custom_call.1']
    %7 = vsyncpa [#allocation3], 0
    %s8 = scalar_lea.sflag [#allocation3], 1
    %9 = vsyncpa %s8, 0
    loop: start=0, step=1, limit=5
    $region2: #{tpu_custom_call.1} parent=1 // loop_pre_header
      _
    $region3: #{tpu_custom_call.1} parent=1 // loop_header
      %s11 = sphi 0, %s15
      %p12 = scmp.ge.s32.totalorder %s11, 5
      %s21 = sphi 0, %s23
      %s24 = sphi 0, %s21
      %s25 = sphi 0, %s24
      %s41 = sphi 0, %s25
      %s47 = sphi 0, %s49
      %s50 = sphi 0, %s47
      %s51 = sphi 0, %s50
      %s67 = sphi 0, %s51
      %s73 = sphi 0, %s75
      %s76 = sphi 0, %s73
      %s77 = sphi 0, %s76
      %s93 = sphi 0, %s77
    $region4: #{tpu_custom_call.1} parent=1 // loop_header_branch
      %14 = sbr.rel (%p12) target = $region8
    $region5: #{tpu_custom_call.1} parent=1 // loop_body
      %s16 = ssub.s32 %s11, 1
      %s17 = ssub.s32 %s11, 2
      %s18 = sadd.s32 %s11, 1
      %s19 = ssub.s32 %s11, %s18
      %p20 = scmp.eq.s32.totalorder %s19, 0
      %s22 = sadd.s32 %s21, 1
      %s23 = scalar_select %p20, %s21, %s22
      %p26 = pneg %p20
      %p27 = scmp.eq.s32.totalorder %s11, 2
      %p28 = por %p26, %p27
      %p29 = scmp.ne.s32.totalorder %s21, %s24
      %p30 = scmp.eq.s32.totalorder %s11, 0
      %p31 = por %p29, %p30
      %p32 = scmp.ne.s32.totalorder %s21, %s24
      %p33 = scmp.eq.s32.totalorder %s16, 2
      %p34 = por %p32, %p33
      %p35 = scmp.ne.s32.totalorder %s24, %s25
      %p36 = scmp.eq.s32.totalorder %s16, 0
      %p37 = por %p35, %p36
      %p38 = scmp.ne.s32.totalorder %s24, %s25
      %p39 = scmp.eq.s32.totalorder %s17, 2
      %p40 = por %p38, %p39
      %p42 = scmp.ne.s32.totalorder %s25, %s41
      %p43 = scmp.eq.s32.totalorder %s17, 0
      %p44 = por %p42, %p43
      %s45 = ssub.s32 %s11, %s18
      %p46 = scmp.eq.s32.totalorder %s45, 0
      %s48 = sadd.s32 %s47, 1
      %s49 = scalar_select %p46, %s47, %s48
      %p52 = pneg %p46
      %p53 = scmp.eq.s32.totalorder %s11, 2
      %p54 = por %p52, %p53
      %p55 = scmp.ne.s32.totalorder %s47, %s50
      %p56 = scmp.eq.s32.totalorder %s11, 0
      %p57 = por %p55, %p56
      %p58 = scmp.ne.s32.totalorder %s47, %s50
      %p59 = scmp.eq.s32.totalorder %s16, 2
      %p60 = por %p58, %p59
      %p61 = scmp.ne.s32.totalorder %s50, %s51
      %p62 = scmp.eq.s32.totalorder %s16, 0
      %p63 = por %p61, %p62
      %p64 = scmp.ne.s32.totalorder %s50, %s51
      %p65 = scmp.eq.s32.totalorder %s17, 2
      %p66 = por %p64, %p65
      %p68 = scmp.ne.s32.totalorder %s51, %s67
      %p69 = scmp.eq.s32.totalorder %s17, 0
      %p70 = por %p68, %p69
      %s71 = ssub.s32 %s11, %s18
      %p72 = scmp.eq.s32.totalorder %s71, 0
      %s74 = sadd.s32 %s73, 1
      %s75 = scalar_select %p72, %s73, %s74
      %p78 = pneg %p72
      %p79 = scmp.eq.s32.totalorder %s11, 2
      %p80 = por %p78, %p79
      %p81 = scmp.ne.s32.totalorder %s73, %s76
      %p82 = scmp.eq.s32.totalorder %s11, 0
      %p83 = por %p81, %p82
      %p84 = scmp.ne.s32.totalorder %s73, %s76
      %p85 = scmp.eq.s32.totalorder %s16, 2
      %p86 = por %p84, %p85
      %p87 = scmp.ne.s32.totalorder %s76, %s77
      %p88 = scmp.eq.s32.totalorder %s16, 0
      %p89 = por %p87, %p88
      %p90 = scmp.ne.s32.totalorder %s76, %s77
      %p91 = scmp.eq.s32.totalorder %s17, 2
      %p92 = por %p90, %p91
      %p94 = scmp.ne.s32.totalorder %s77, %s93
      %p95 = scmp.eq.s32.totalorder %s17, 0
      %p96 = por %p94, %p95
      %p97 = scmp.le.s32.totalorder 1, %s11
      %p98 = scmp.lt.s32.totalorder %s11, 4
      %p99 = pnand %p97, %p98
      %p100 = pneg %p99
      // Predicated region
      $region9: #{tpu_custom_call.1} parent=5 // pred_check
        _
      $region10: #{tpu_custom_call.1} parent=5 // pred_check_branch
        %102 = sbr.rel (%p99) target = $region12
      $region11: #{tpu_custom_call.1} parent=5 // pred_region
        %s103 = ssub.s32 %s11, 1
      $region12: #{tpu_custom_call.1} parent=5 // pred_fallthru
        _
      %p104 = scmp.lt.s32.totalorder %s11, 3
      // Predicated region
      $region13: #{tpu_custom_call.1} parent=5 // pred_check
        %p105 = pneg %p104
      $region14: #{tpu_custom_call.1} parent=5 // pred_check_branch
        %107 = sbr.rel (%p105) target = $region16
      $region15: #{tpu_custom_call.1} parent=5 // pred_region
        // Predicated region
        $region17: #{tpu_custom_call.1} parent=15 // pred_check
          %p108 = pneg %p31
        $region18: #{tpu_custom_call.1} parent=15 // pred_check_branch
          %110 = sbr.rel (%p108) target = $region20
        $region19: #{tpu_custom_call.1} parent=15 // pred_region
          %s111 = smul.u32 15, %s11
          %p112 = scmp.lt.s32.totalorder %s111, 44
          %s113 = scalar_select %p112, %s111, 44
          %s114 = smul.addr %s113, 8
          %s115 = scalar_lea.vmem %s0, %s114
          %s116 = smul.u32 15, %s11
        $region20: #{tpu_custom_call.1} parent=15 // pred_fallthru
          _
        // Predicated region
        $region21: #{tpu_custom_call.1} parent=15 // pred_check
          %p117 = pneg %p57
        $region22: #{tpu_custom_call.1} parent=15 // pred_check_branch
          %119 = sbr.rel (%p117) target = $region24
        $region23: #{tpu_custom_call.1} parent=15 // pred_region
          %s120 = smul.u32 15, %s11
          %p121 = scmp.lt.s32.totalorder %s120, 44
          %s122 = scalar_select %p121, %s120, 44
          %s123 = smul.addr %s122, 8
          %s124 = scalar_lea.vmem %s1, %s123
          %s125 = smul.u32 15, %s11
        $region24: #{tpu_custom_call.1} parent=15 // pred_fallthru
          _
      $region16: #{tpu_custom_call.1} parent=5 // pred_fallthru
        _
      %p126 = scmp.le.s32.totalorder 1, %s11
      %p127 = scmp.lt.s32.totalorder %s11, 4
      %p128 = pnand %p126, %p127
      %p129 = pneg %p128
      // Predicated region
      $region25: #{tpu_custom_call.1} parent=5 // pred_check
        _
      $region26: #{tpu_custom_call.1} parent=5 // pred_check_branch
        %131 = sbr.rel (%p128) target = $region28
      $region27: #{tpu_custom_call.1} parent=5 // pred_region
        %s132 = ssub.s32 %s11, 1
        %s133 = smul.u32 15, %s16
        %p134 = scmp.lt.s32.totalorder %s133, 44
        %s135 = scalar_select %p134, %s133, 44
        %s136 = smul.addr %s135, 8
        %s137 = scalar_lea.vmem %s0, %s136
        %p138 = pneg %p37
        %p139 = pneg %p34
        %s140 = smul.u32 15, %s16
        %p141 = scmp.lt.s32.totalorder %s140, 44
        %s142 = scalar_select %p141, %s140, 44
        %s143 = smul.addr %s142, 8
        %s144 = scalar_lea.vmem %s1, %s143
        %p145 = pneg %p63
        %p146 = pneg %p60
        %p147 = pneg %p89
        %p148 = pneg %p86
        %s149 = sand.u32 %s76, 1
        %s150 = scalar_lea.sflag [#allocation3], %s149
        %s151 = sand.u32 %s76, 1
        %s152 = scalar_lea.vmem [#allocation2], %s151
        %s153 = smul.u32 15, %s16
        %p154 = scmp.lt.s32.totalorder %s153, 44
        %s155 = scalar_select %p154, %s153, 44
        %s156 = smul.addr %s155, 8
        %s157 = scalar_lea.vmem %s0, %s156
        %s158 = smul.u32 15, %s16
        %s159 = smul.u32 15, %s16
        %p160 = scmp.lt.s32.totalorder %s159, 44
        %s161 = scalar_select %p160, %s159, 44
        %s162 = smul.addr %s161, 8
        %s163 = scalar_lea.vmem %s1, %s162
        %s164 = smul.u32 15, %s16
        %v165 = vld [vmem:[%s157] sm:$0xff]
        %v166 = vld [vmem:[%s157 + $0x8] sm:$0xff]
        %v167 = vld [vmem:[%s157 + $0x10] sm:$0xff]
        %v168 = vld [vmem:[%s157 + $0x18] sm:$0xff]
        %v169 = vld [vmem:[%s157 + $0x20] sm:$0xff]
        %v170 = vld [vmem:[%s157 + $0x28] sm:$0xff]
        %v171 = vld [vmem:[%s157 + $0x30] sm:$0xff]
        %v172 = vld [vmem:[%s157 + $0x38] sm:$0xff]
        %v173 = vld [vmem:[%s157 + $0x40] sm:$0xff]
        %v174 = vld [vmem:[%s157 + $0x48] sm:$0xff]
        %v175 = vld [vmem:[%s157 + $0x50] sm:$0xff]
        %v176 = vld [vmem:[%s157 + $0x58] sm:$0xff]
        %v177 = vld [vmem:[%s157 + $0x60] sm:$0xff]
        %v178 = vld [vmem:[%s157 + $0x68] sm:$0xff]
        %v179 = vld [vmem:[%s157 + $0x70] sm:$0xff]
        %v180 = vld [vmem:[%s163] sm:$0xff]
        %v181 = vld [vmem:[%s163 + $0x8] sm:$0xff]
        %v182 = vld [vmem:[%s163 + $0x10] sm:$0xff]
        %v183 = vld [vmem:[%s163 + $0x18] sm:$0xff]
        %v184 = vld [vmem:[%s163 + $0x20] sm:$0xff]
        %v185 = vld [vmem:[%s163 + $0x28] sm:$0xff]
        %v186 = vld [vmem:[%s163 + $0x30] sm:$0xff]
        %v187 = vld [vmem:[%s163 + $0x38] sm:$0xff]
        %v188 = vld [vmem:[%s163 + $0x40] sm:$0xff]
        %v189 = vld [vmem:[%s163 + $0x48] sm:$0xff]
        %v190 = vld [vmem:[%s163 + $0x50] sm:$0xff]
        %v191 = vld [vmem:[%s163 + $0x58] sm:$0xff]
        %v192 = vld [vmem:[%s163 + $0x60] sm:$0xff]
        %v193 = vld [vmem:[%s163 + $0x68] sm:$0xff]
        %v194 = vld [vmem:[%s163 + $0x70] sm:$0xff]
        %vm195 = vcmask 261120
        %v196 = vsel %vm195, %v165, -inf
        %197 = vmax.xlane.f32.xlu0 %v196
        %v198 = vpop.xlane.xlu0 %197
        %v199 = vsel %vm195, %v166, -inf
        %200 = vmax.xlane.f32.xlu0 %v199
        %v201 = vpop.xlane.xlu0 %200
        %v202 = vsel %vm195, %v167, -inf
        %203 = vmax.xlane.f32.xlu0 %v202
        %v204 = vpop.xlane.xlu0 %203
        %v205 = vsel %vm195, %v168, -inf
        %206 = vmax.xlane.f32.xlu0 %v205
        %v207 = vpop.xlane.xlu0 %206
        %v208 = vsel %vm195, %v169, -inf
        %209 = vmax.xlane.f32.xlu0 %v208
        %v210 = vpop.xlane.xlu0 %209
        %v211 = vsel %vm195, %v170, -inf
        %212 = vmax.xlane.f32.xlu0 %v211
        %v213 = vpop.xlane.xlu0 %212
        %v214 = vsel %vm195, %v171, -inf
        %215 = vmax.xlane.f32.xlu0 %v214
        %v216 = vpop.xlane.xlu0 %215
        %v217 = vsel %vm195, %v172, -inf
        %218 = vmax.xlane.f32.xlu0 %v217
        %v219 = vpop.xlane.xlu0 %218
        %v220 = vsel %vm195, %v173, -inf
        %221 = vmax.xlane.f32.xlu0 %v220
        %v222 = vpop.xlane.xlu0 %221
        %v223 = vsel %vm195, %v174, -inf
        %224 = vmax.xlane.f32.xlu0 %v223
        %v225 = vpop.xlane.xlu0 %224
        %v226 = vsel %vm195, %v175, -inf
        %227 = vmax.xlane.f32.xlu0 %v226
        %v228 = vpop.xlane.xlu0 %227
        %v229 = vsel %vm195, %v176, -inf
        %230 = vmax.xlane.f32.xlu0 %v229
        %v231 = vpop.xlane.xlu0 %230
        %v232 = vsel %vm195, %v177, -inf
        %233 = vmax.xlane.f32.xlu0 %v232
        %v234 = vpop.xlane.xlu0 %233
        %v235 = vsel %vm195, %v178, -inf
        %236 = vmax.xlane.f32.xlu0 %v235
        %v237 = vpop.xlane.xlu0 %236
        %v238 = vsel %vm195, %v179, -inf
        %239 = vmax.xlane.f32.xlu0 %v238
        %v240 = vpop.xlane.xlu0 %239
        %v241 = vsub.f32 %v165, %v198
        %v242 = vsub.f32 %v166, %v201
        %v243 = vsub.f32 %v167, %v204
        %v244 = vsub.f32 %v168, %v207
        %v245 = vsub.f32 %v169, %v210
        %v246 = vsub.f32 %v170, %v213
        %v247 = vsub.f32 %v171, %v216
        %v248 = vsub.f32 %v172, %v219
        %v249 = vsub.f32 %v173, %v222
        %v250 = vsub.f32 %v174, %v225
        %v251 = vsub.f32 %v175, %v228
        %v252 = vsub.f32 %v176, %v231
        %v253 = vsub.f32 %v177, %v234
        %v254 = vsub.f32 %v178, %v237
        %v255 = vsub.f32 %v179, %v240
        %v256 = vmul.f32 %v241, 1.442695
        %v257 = vpow.pop %v256
        %v258 = vmul.f32 %v242, 1.442695
        %v259 = vpow.pop %v258
        %v260 = vmul.f32 %v243, 1.442695
        %v261 = vpow.pop %v260
        %v262 = vmul.f32 %v244, 1.442695
        %v263 = vpow.pop %v262
        %v264 = vmul.f32 %v245, 1.442695
        %v265 = vpow.pop %v264
        %v266 = vmul.f32 %v246, 1.442695
        %v267 = vpow.pop %v266
        %v268 = vmul.f32 %v247, 1.442695
        %v269 = vpow.pop %v268
        %v270 = vmul.f32 %v248, 1.442695
        %v271 = vpow.pop %v270
        %v272 = vmul.f32 %v249, 1.442695
        %v273 = vpow.pop %v272
        %v274 = vmul.f32 %v250, 1.442695
        %v275 = vpow.pop %v274
        %v276 = vmul.f32 %v251, 1.442695
        %v277 = vpow.pop %v276
        %v278 = vmul.f32 %v252, 1.442695
        %v279 = vpow.pop %v278
        %v280 = vmul.f32 %v253, 1.442695
        %v281 = vpow.pop %v280
        %v282 = vmul.f32 %v254, 1.442695
        %v283 = vpow.pop %v282
        %v284 = vmul.f32 %v255, 1.442695
        %v285 = vpow.pop %v284
        %v286 = vsel %vm195, %v257, 0.0
        %287 = vadd.xlane.f32.xlu0 %v286
        %v288 = vpop.xlane.xlu0 %287
        %v289 = vsel %vm195, %v259, 0.0
        %290 = vadd.xlane.f32.xlu0 %v289
        %v291 = vpop.xlane.xlu0 %290
        %v292 = vsel %vm195, %v261, 0.0
        %293 = vadd.xlane.f32.xlu0 %v292
        %v294 = vpop.xlane.xlu0 %293
        %v295 = vsel %vm195, %v263, 0.0
        %296 = vadd.xlane.f32.xlu0 %v295
        %v297 = vpop.xlane.xlu0 %296
        %v298 = vsel %vm195, %v265, 0.0
        %299 = vadd.xlane.f32.xlu0 %v298
        %v300 = vpop.xlane.xlu0 %299
        %v301 = vsel %vm195, %v267, 0.0
        %302 = vadd.xlane.f32.xlu0 %v301
        %v303 = vpop.xlane.xlu0 %302
        %v304 = vsel %vm195, %v269, 0.0
        %305 = vadd.xlane.f32.xlu0 %v304
        %v306 = vpop.xlane.xlu0 %305
        %v307 = vsel %vm195, %v271, 0.0
        %308 = vadd.xlane.f32.xlu0 %v307
        %v309 = vpop.xlane.xlu0 %308
        %v310 = vsel %vm195, %v273, 0.0
        %311 = vadd.xlane.f32.xlu0 %v310
        %v312 = vpop.xlane.xlu0 %311
        %v313 = vsel %vm195, %v275, 0.0
        %314 = vadd.xlane.f32.xlu0 %v313
        %v315 = vpop.xlane.xlu0 %314
        %v316 = vsel %vm195, %v277, 0.0
        %317 = vadd.xlane.f32.xlu0 %v316
        %v318 = vpop.xlane.xlu0 %317
        %v319 = vsel %vm195, %v279, 0.0
        %320 = vadd.xlane.f32.xlu0 %v319
        %v321 = vpop.xlane.xlu0 %320
        %v322 = vsel %vm195, %v281, 0.0
        %323 = vadd.xlane.f32.xlu0 %v322
        %v324 = vpop.xlane.xlu0 %323
        %v325 = vsel %vm195, %v283, 0.0
        %326 = vadd.xlane.f32.xlu0 %v325
        %v327 = vpop.xlane.xlu0 %326
        %v328 = vsel %vm195, %v285, 0.0
        %329 = vadd.xlane.f32.xlu0 %v328
        %v330 = vpop.xlane.xlu0 %329
        %v331 = vrcp.pop %v288
        %v332 = vrcp.pop %v291
        %v333 = vrcp.pop %v294
        %v334 = vrcp.pop %v297
        %v335 = vrcp.pop %v300
        %v336 = vrcp.pop %v303
        %v337 = vrcp.pop %v306
        %v338 = vrcp.pop %v309
        %v339 = vrcp.pop %v312
        %v340 = vrcp.pop %v315
        %v341 = vrcp.pop %v318
        %v342 = vrcp.pop %v321
        %v343 = vrcp.pop %v324
        %v344 = vrcp.pop %v327
        %v345 = vrcp.pop %v330
        %v346 = vmul.f32 %v257, %v331
        %v347 = vmul.f32 %v259, %v332
        %v348 = vmul.f32 %v261, %v333
        %v349 = vmul.f32 %v263, %v334
        %v350 = vmul.f32 %v265, %v335
        %v351 = vmul.f32 %v267, %v336
        %v352 = vmul.f32 %v269, %v337
        %v353 = vmul.f32 %v271, %v338
        %v354 = vmul.f32 %v273, %v339
        %v355 = vmul.f32 %v275, %v340
        %v356 = vmul.f32 %v277, %v341
        %v357 = vmul.f32 %v279, %v342
        %v358 = vmul.f32 %v281, %v343
        %v359 = vmul.f32 %v283, %v344
        %v360 = vmul.f32 %v285, %v345
        %v361 = vsub.f32 %v346, %v180
        %v362 = vsub.f32 %v347, %v181
        %v363 = vsub.f32 %v348, %v182
        %v364 = vsub.f32 %v349, %v183
        %v365 = vsub.f32 %v350, %v184
        %v366 = vsub.f32 %v351, %v185
        %v367 = vsub.f32 %v352, %v186
        %v368 = vsub.f32 %v353, %v187
        %v369 = vsub.f32 %v354, %v188
        %v370 = vsub.f32 %v355, %v189
        %v371 = vsub.f32 %v356, %v190
        %v372 = vsub.f32 %v357, %v191
        %v373 = vsub.f32 %v358, %v192
        %v374 = vsub.f32 %v359, %v193
        %v375 = vsub.f32 %v360, %v194
        %v376 = vmul.f32 %v361, %v361
        %v377 = vmul.f32 %v362, %v362
        %v378 = vmul.f32 %v363, %v363
        %v379 = vmul.f32 %v364, %v364
        %v380 = vmul.f32 %v365, %v365
        %v381 = vmul.f32 %v366, %v366
        %v382 = vmul.f32 %v367, %v367
        %v383 = vmul.f32 %v368, %v368
        %v384 = vmul.f32 %v369, %v369
        %v385 = vmul.f32 %v370, %v370
        %v386 = vmul.f32 %v371, %v371
        %v387 = vmul.f32 %v372, %v372
        %v388 = vmul.f32 %v373, %v373
        %v389 = vmul.f32 %v374, %v374
        %v390 = vmul.f32 %v375, %v375
        %v391 = vsel %vm195, %v376, 0.0
        %392 = vadd.xlane.f32.xlu0 %v391
        %v393 = vpop.xlane.xlu0 %392
        %v394 = vsel %vm195, %v377, 0.0
        %395 = vadd.xlane.f32.xlu0 %v394
        %v396 = vpop.xlane.xlu0 %395
        %v397 = vsel %vm195, %v378, 0.0
        %398 = vadd.xlane.f32.xlu0 %v397
        %v399 = vpop.xlane.xlu0 %398
        %v400 = vsel %vm195, %v379, 0.0
        %401 = vadd.xlane.f32.xlu0 %v400
        %v402 = vpop.xlane.xlu0 %401
        %v403 = vsel %vm195, %v380, 0.0
        %404 = vadd.xlane.f32.xlu0 %v403
        %v405 = vpop.xlane.xlu0 %404
        %v406 = vsel %vm195, %v381, 0.0
        %407 = vadd.xlane.f32.xlu0 %v406
        %v408 = vpop.xlane.xlu0 %407
        %v409 = vsel %vm195, %v382, 0.0
        %410 = vadd.xlane.f32.xlu0 %v409
        %v411 = vpop.xlane.xlu0 %410
        %v412 = vsel %vm195, %v383, 0.0
        %413 = vadd.xlane.f32.xlu0 %v412
        %v414 = vpop.xlane.xlu0 %413
        %v415 = vsel %vm195, %v384, 0.0
        %416 = vadd.xlane.f32.xlu0 %v415
        %v417 = vpop.xlane.xlu0 %416
        %v418 = vsel %vm195, %v385, 0.0
        %419 = vadd.xlane.f32.xlu0 %v418
        %v420 = vpop.xlane.xlu0 %419
        %v421 = vsel %vm195, %v386, 0.0
        %422 = vadd.xlane.f32.xlu0 %v421
        %v423 = vpop.xlane.xlu0 %422
        %v424 = vsel %vm195, %v387, 0.0
        %425 = vadd.xlane.f32.xlu0 %v424
        %v426 = vpop.xlane.xlu0 %425
        %v427 = vsel %vm195, %v388, 0.0
        %428 = vadd.xlane.f32.xlu0 %v427
        %v429 = vpop.xlane.xlu0 %428
        %v430 = vsel %vm195, %v389, 0.0
        %431 = vadd.xlane.f32.xlu0 %v430
        %v432 = vpop.xlane.xlu0 %431
        %v433 = vsel %vm195, %v390, 0.0
        %434 = vadd.xlane.f32.xlu0 %v433
        %v435 = vpop.xlane.xlu0 %434
        %v436 = vmul.f32 %v393, 0.03125
        %v437 = vmul.f32 %v396, 0.03125
        %v438 = vmul.f32 %v399, 0.03125
        %v439 = vmul.f32 %v402, 0.03125
        %v440 = vmul.f32 %v405, 0.03125
        %v441 = vmul.f32 %v408, 0.03125
        %v442 = vmul.f32 %v411, 0.03125
        %v443 = vmul.f32 %v414, 0.03125
        %v444 = vmul.f32 %v417, 0.03125
        %v445 = vmul.f32 %v420, 0.03125
        %v446 = vmul.f32 %v423, 0.03125
        %v447 = vmul.f32 %v426, 0.03125
        %v448 = vmul.f32 %v429, 0.03125
        %v449 = vmul.f32 %v432, 0.03125
        %v450 = vmul.f32 %v435, 0.03125
        %v466 = vlaneseq
        %v467 = vand.u32 %v466, 127
        %v468 = vlaneseq
        %v469 = vshrl.u32 %v468, 7
        %v470 = vsub.s32 %v467, %v469
        %v471 = vrot.slane %v436, %v470
        %v472 = vadd.s32 %v467, 4294967288
        %v473 = vlaneseq
        %v474 = vshrl.u32 %v473, 7
        %v475 = vsub.s32 %v472, %v474
        %v476 = vrot.slane %v437, %v475
        %vm477 = vcmask 130112
        %v478 = vsel %vm477, %v476, %v471
        %v479 = vadd.s32 %v467, 4294967280
        %v480 = vlaneseq
        %v481 = vshrl.u32 %v480, 7
        %v482 = vsub.s32 %v479, %v481
        %v483 = vrot.slane %v438, %v482
        %vm484 = vcmask 195712
        %v485 = vsel %vm484, %v483, %v478
        %v486 = vadd.s32 %v467, 4294967272
        %v487 = vlaneseq
        %v488 = vshrl.u32 %v487, 7
        %v489 = vsub.s32 %v486, %v488
        %v490 = vrot.slane %v439, %v489
        %vm491 = vcmask 261312
        %v492 = vsel %vm491, %v490, %v485
        %v493 = vadd.s32 %v467, 4294967264
        %v494 = vlaneseq
        %v495 = vshrl.u32 %v494, 7
        %v496 = vsub.s32 %v493, %v495
        %v497 = vrot.slane %v440, %v496
        %vm498 = vcmask 326912
        %v499 = vsel %vm498, %v497, %v492
        %v500 = vadd.s32 %v467, 4294967256
        %v501 = vlaneseq
        %v502 = vshrl.u32 %v501, 7
        %v503 = vsub.s32 %v500, %v502
        %v504 = vrot.slane %v441, %v503
        %vm505 = vcmask 392512
        %v506 = vsel %vm505, %v504, %v499
        %v507 = vadd.s32 %v467, 4294967248
        %v508 = vlaneseq
        %v509 = vshrl.u32 %v508, 7
        %v510 = vsub.s32 %v507, %v509
        %v511 = vrot.slane %v442, %v510
        %vm512 = vcmask 458112
        %v513 = vsel %vm512, %v511, %v506
        %v514 = vadd.s32 %v467, 4294967240
        %v515 = vlaneseq
        %v516 = vshrl.u32 %v515, 7
        %v517 = vsub.s32 %v514, %v516
        %v518 = vrot.slane %v443, %v517
        %vm519 = vcmask 523712
        %v520 = vsel %vm519, %v518, %v513
        %v521 = vadd.s32 %v467, 4294967232
        %v522 = vlaneseq
        %v523 = vshrl.u32 %v522, 7
        %v524 = vsub.s32 %v521, %v523
        %v525 = vrot.slane %v444, %v524
        %vm526 = vcmask 589312
        %v527 = vsel %vm526, %v525, %v520
        %v528 = vadd.s32 %v467, 4294967224
        %v529 = vlaneseq
        %v530 = vshrl.u32 %v529, 7
        %v531 = vsub.s32 %v528, %v530
        %v532 = vrot.slane %v445, %v531
        %vm533 = vcmask 654912
        %v534 = vsel %vm533, %v532, %v527
        %v535 = vadd.s32 %v467, 4294967216
        %v536 = vlaneseq
        %v537 = vshrl.u32 %v536, 7
        %v538 = vsub.s32 %v535, %v537
        %v539 = vrot.slane %v446, %v538
        %vm540 = vcmask 720512
        %v541 = vsel %vm540, %v539, %v534
        %v542 = vadd.s32 %v467, 4294967208
        %v543 = vlaneseq
        %v544 = vshrl.u32 %v543, 7
        %v545 = vsub.s32 %v542, %v544
        %v546 = vrot.slane %v447, %v545
        %vm547 = vcmask 786112
        %v548 = vsel %vm547, %v546, %v541
        %v549 = vadd.s32 %v467, 4294967200
        %v550 = vlaneseq
        %v551 = vshrl.u32 %v550, 7
        %v552 = vsub.s32 %v549, %v551
        %v553 = vrot.slane %v448, %v552
        %vm554 = vcmask 851712
        %v555 = vsel %vm554, %v553, %v548
        %v556 = vadd.s32 %v467, 4294967192
        %v557 = vlaneseq
        %v558 = vshrl.u32 %v557, 7
        %v559 = vsub.s32 %v556, %v558
        %v560 = vrot.slane %v449, %v559
        %vm561 = vcmask 917312
        %v562 = vsel %vm561, %v560, %v555
        %v563 = vadd.s32 %v467, 4294967184
        %v564 = vlaneseq
        %v565 = vshrl.u32 %v564, 7
        %v566 = vsub.s32 %v563, %v565
        %v567 = vrot.slane %v450, %v566
        %vm568 = vcmask 982912
        %v569 = vsel %vm568, %v567, %v562
        %vm571 = vcmask 974848
        %572 = vst.msk [vmem:[%s152] sm:$0x1] %vm571, %v569
        %s573 = sand.u32 %s76, 1
        %s574 = scalar_lea.sflag [#allocation3], %s573
        %s575 = sand.u32 %s76, 1
        %s576 = scalar_lea.vmem [#allocation2], %s575
        // Predicated region
        $region29: #{tpu_custom_call.1} parent=27 // pred_check
          %p577 = pneg %p86
        $region30: #{tpu_custom_call.1} parent=27 // pred_check_branch
          %579 = sbr.rel (%p577) target = $region32
        $region31: #{tpu_custom_call.1} parent=27 // pred_region
          %s581 = ssub.s32 16, 16
          %582 = vsyncadd %s574, %s581
          %s583 = smul.addr %s16, 16
          %s584 = scalar_lea.hbm %s2, %s583
          %s586 = sshll.u32 %s576, 4
          %s587 = int_to_ptr.vmem [resolvable:$true] %s586
          %589 = dma.vmem_to_hbm [thread:$0]  %s587, 16, %s584, %s574
        $region32: #{tpu_custom_call.1} parent=27 // pred_fallthru
          _
      $region28: #{tpu_custom_call.1} parent=5 // pred_fallthru
        _
      %p590 = scmp.le.s32.totalorder 2, %s11
      // Predicated region
      $region33: #{tpu_custom_call.1} parent=5 // pred_check
        %p591 = pneg %p590
      $region34: #{tpu_custom_call.1} parent=5 // pred_check_branch
        %593 = sbr.rel (%p591) target = $region36
      $region35: #{tpu_custom_call.1} parent=5 // pred_region
        %s594 = ssub.s32 %s11, 2
        // Predicated region
        $region37: #{tpu_custom_call.1} parent=35 // pred_check
          %p595 = pneg %p92
        $region38: #{tpu_custom_call.1} parent=35 // pred_check_branch
          %597 = sbr.rel (%p595) target = $region40
        $region39: #{tpu_custom_call.1} parent=35 // pred_region
          %s598 = sand.u32 %s77, 1
          %s599 = scalar_lea.sflag [#allocation3], %s598
          %s600 = sand.u32 %s77, 1
          %s601 = scalar_lea.vmem [#allocation2], %s600
          %602 = dma.done %s599, 16
        $region40: #{tpu_custom_call.1} parent=35 // pred_fallthru
          _
      $region36: #{tpu_custom_call.1} parent=5 // pred_fallthru
        _
    $region6: #{tpu_custom_call.1} parent=1 // loop_footer
      %s15 = sadd.s32 1, %s11
    $region7: #{tpu_custom_call.1} parent=1 // loop_footer_branch
      %10 = sbr.rel target = $region3
    $region8: #{tpu_custom_call.1} parent=1 // loop_exit
      _
    %603 = vsyncpa [#allocation3], 1
    %s604 = scalar_lea.sflag [#allocation3], 1
    %605 = vsyncpa %s604, 1

</llo_original>
